<compile_context>
chip_gen: v7x
topology: tpu7x:2x2x1
jax: 0.10.0
libtpu: 0.0.40
codegen_flags: <defaults>
</compile_context>

<pallas_src>
import jax
import jax.numpy as jnp
from jax.experimental import pallas as pl
from jax.experimental.pallas import tpu as pltpu

F32 = jnp.float32

# ---- model / test dimensions (small, consistent with the module) ----
INPUT_DIM = 64      # input_dim
HIDDEN_DIM = 64     # hidden_dim  (second Linear outputs hidden_dim // 2 = 32)
B, T = 2, 8         # batch, sequence length


_VMEM = pl.BlockSpec(memory_space=pltpu.MemorySpace.VMEM)


def _prenet_kernel(x_ref, w1_ref, b1_ref, w2_ref, b2_ref, o_ref):
    # Layer 1: Linear -> ReLU   (Dropout = identity, eval mode)
    h = jnp.dot(x_ref[...], w1_ref[...],
                preferred_element_type=jnp.float32) + b1_ref[...]
    h = jnp.maximum(h, 0.0)
    # Layer 2: Linear -> ReLU   (Dropout = identity, eval mode)
    y = jnp.dot(h, w2_ref[...],
                preferred_element_type=jnp.float32) + b2_ref[...]
    y = jnp.maximum(y, 0.0)
    o_ref[...] = y.astype(o_ref.dtype)


def pre_net(x, w1, b1, w2, b2):
    """x: [..., input_dim] -> [..., hidden_dim // 2].

    Single fused Pallas call; everything lives in VMEM (no grid).
    """
    lead_shape = x.shape[:-1]
    din = x.shape[-1]
    n = 1
    for d in lead_shape:
        n *= d
    dout = w2.shape[1]

    x2d = x.reshape(n, din).astype(F32)
    out = pl.pallas_call(
        _prenet_kernel,
        out_shape=jax.ShapeDtypeStruct((n, dout), F32),
        in_specs=[_VMEM, _VMEM, _VMEM, _VMEM, _VMEM],
        out_specs=_VMEM,
    )(x2d,
      w1.astype(F32), b1.reshape(1, -1).astype(F32),
      w2.astype(F32), b2.reshape(1, -1).astype(F32))
    return out.reshape(*lead_shape, dout)


def init_params(key, input_dim, hidden_dim):
    k1, k2, k3, k4 = jax.random.split(key, 4)
    scale1 = 1.0 / jnp.sqrt(jnp.float32(input_dim))
    scale2 = 1.0 / jnp.sqrt(jnp.float32(hidden_dim))
    w1 = scale1 * jax.random.normal(k1, (input_dim, hidden_dim), dtype=F32)
    b1 = scale1 * jax.random.normal(k2, (hidden_dim,), dtype=F32)
    w2 = scale2 * jax.random.normal(k3, (hidden_dim, hidden_dim // 2), dtype=F32)
    b2 = scale2 * jax.random.normal(k4, (hidden_dim // 2,), dtype=F32)
    return w1, b1, w2, b2


if __name__ == "__main__":
    key = jax.random.PRNGKey(0)
    kp, kx = jax.random.split(key)

    w1, b1, w2, b2 = init_params(kp, INPUT_DIM, HIDDEN_DIM)
    x = jax.random.normal(kx, (B, T, INPUT_DIM), dtype=F32)

    out = pre_net(x, w1, b1, w2, b2)
    out = jax.block_until_ready(out)

    assert out.shape == (B, T, HIDDEN_DIM // 2), out.shape
    assert bool(jnp.all(jnp.isfinite(out)))
    assert bool(jnp.all(out >= 0.0))  # final ReLU

    # Reference check against plain JAX (eval-mode PyTorch forward).
    ref_h = jnp.maximum(x.reshape(-1, INPUT_DIM) @ w1 + b1, 0.0)
    ref = jnp.maximum(ref_h @ w2 + b2, 0.0).reshape(B, T, HIDDEN_DIM // 2)
    assert bool(jnp.allclose(out, ref, atol=1e-5, rtol=1e-5))

    print("KERNEL_OK")
</pallas_src>

<mosaic_0001>
module attributes {stable_mosaic.version = 11 : i64} {
  func.func @_prenet_kernel(%arg0: memref<16x64xf32, #tpu.memory_space<vmem>>, %arg1: memref<64x64xf32, #tpu.memory_space<vmem>>, %arg2: memref<1x64xf32, #tpu.memory_space<vmem>>, %arg3: memref<64x32xf32, #tpu.memory_space<vmem>>, %arg4: memref<1x32xf32, #tpu.memory_space<vmem>>, %arg5: memref<16x32xf32, #tpu.memory_space<vmem>>) attributes {dimension_semantics = [], scalar_prefetch = 0 : i64, scratch_operands = 0 : i64, tpu.core_type = #tpu.core_type<tc>} {
    %c0 = arith.constant 0 : index
    %c0_0 = arith.constant 0 : index
    %0 = vector.load %arg0[%c0, %c0_0] : memref<16x64xf32, #tpu.memory_space<vmem>>, vector<16x64xf32>
    %c0_1 = arith.constant 0 : index
    %c0_2 = arith.constant 0 : index
    %1 = vector.load %arg1[%c0_1, %c0_2] : memref<64x64xf32, #tpu.memory_space<vmem>>, vector<64x64xf32>
    %cst = arith.constant dense<0.000000e+00> : vector<16x64xf32>
    %2 = tpu.matmul %0, %1, %cst {dimension_numbers = #tpu.dot_dimension_numbers<[1], [0], [0], [1], [0, 0, 1, 1], [], []>} : vector<16x64xf32>, vector<64x64xf32>, vector<16x64xf32> -> vector<16x64xf32>
    %c0_3 = arith.constant 0 : index
    %c0_4 = arith.constant 0 : index
    %3 = vector.load %arg2[%c0_3, %c0_4] : memref<1x64xf32, #tpu.memory_space<vmem>>, vector<1x64xf32>
    %4 = vector.broadcast %3 : vector<1x64xf32> to vector<16x64xf32>
    %5 = arith.addf %2, %4 : vector<16x64xf32>
    %cst_5 = arith.constant 0.000000e+00 : f32
    %6 = vector.broadcast %cst_5 : f32 to vector<16x64xf32>
    %7 = arith.maximumf %5, %6 : vector<16x64xf32>
    %c0_6 = arith.constant 0 : index
    %c0_7 = arith.constant 0 : index
    %8 = vector.load %arg3[%c0_6, %c0_7] : memref<64x32xf32, #tpu.memory_space<vmem>>, vector<64x32xf32>
    %cst_8 = arith.constant dense<0.000000e+00> : vector<16x32xf32>
    %9 = tpu.matmul %7, %8, %cst_8 {dimension_numbers = #tpu.dot_dimension_numbers<[1], [0], [0], [1], [0, 0, 1, 1], [], []>} : vector<16x64xf32>, vector<64x32xf32>, vector<16x32xf32> -> vector<16x32xf32>
    %c0_9 = arith.constant 0 : index
    %c0_10 = arith.constant 0 : index
    %10 = vector.load %arg4[%c0_9, %c0_10] : memref<1x32xf32, #tpu.memory_space<vmem>>, vector<1x32xf32>
    %11 = vector.broadcast %10 : vector<1x32xf32> to vector<16x32xf32>
    %12 = arith.addf %9, %11 : vector<16x32xf32>
    %cst_11 = arith.constant 0.000000e+00 : f32
    %13 = vector.broadcast %cst_11 : f32 to vector<16x32xf32>
    %14 = arith.maximumf %12, %13 : vector<16x32xf32>
    %c0_12 = arith.constant 0 : index
    %c0_13 = arith.constant 0 : index
    %15 = vector.load %arg5[%c0_12, %c0_13] : memref<16x32xf32, #tpu.memory_space<vmem>>, vector<16x32xf32>
    tpu.vector_store %arg5[%c0_12, %c0_13], %14 {strides = array<i32>} : memref<16x32xf32, #tpu.memory_space<vmem>>, vector<16x32xf32>,
    return
  }
}

</mosaic_0001>

<llo_original>
// kernel: tpu_custom_call.1
$region0: #{tpu_custom_call.1}
  #allocation0 [shape = 'u32[]', space=smem, size = 0x4, offset = 0x4, fixed_abs, tag = 'smem constant byte address 0x4 - core index']
  #allocation1 [shape = 'u32[144,128]{1,0:T(1,128)}', space=vmem, size = 0x12000, scoped, tag = 'internal scratch']
  %s0 = inlined_call_operand.vmem [shape: f32[16,64], index: 0, kind: input, shape index: {}]
  %s1 = inlined_call_operand.vmem [shape: f32[64,64], index: 1, kind: input, shape index: {}]
  %s2 = inlined_call_operand.vmem [shape: f32[1,64], index: 2, kind: input, shape index: {}]
  %s3 = inlined_call_operand.vmem [shape: f32[64,32], index: 3, kind: input, shape index: {}]
  %s4 = inlined_call_operand.vmem [shape: f32[1,32], index: 4, kind: input, shape index: {}]
  %s5 = inlined_call_operand.hbm [shape: f32[16,32], index: 5, kind: output, shape index: {}]
  %s6 = sld [smem:[#allocation0]]
  $region30: #{tpu_custom_call.1} parent=0
    _
  %s8 = ssub.s32 1, %s6
  %s9 = scalar_select 0, %s8, %s6
  $region1: #{tpu_custom_call.1} parent=0
    #allocation2 [shape = 'u8[8192]{0}', space=vmem, size = 0x2000, scoped, tag = 'output window, operand 0, single buffered']
    #allocation3 [shape = 's32[1]{0}', space=sflag, size = 0x4, scoped, tag = 'scoped memory for tpu_custom_call.1']
    %10 = vsyncpa [#allocation3], 0
    // Predicated region
    $region2: #{tpu_custom_call.1} parent=1 // pred_check
      _
    $region3: #{tpu_custom_call.1} parent=1 // pred_check_branch
      %12 = sbr.rel (0) target = $region5
    $region4: #{tpu_custom_call.1} parent=1 // pred_region
      _
    $region5: #{tpu_custom_call.1} parent=1 // pred_fallthru
      _
    // Predicated region
    $region6: #{tpu_custom_call.1} parent=1 // pred_check
      _
    $region7: #{tpu_custom_call.1} parent=1 // pred_check_branch
      %14 = sbr.rel (0) target = $region9
    $region8: #{tpu_custom_call.1} parent=1 // pred_region
      _
    $region9: #{tpu_custom_call.1} parent=1 // pred_fallthru
      _
    // Predicated region
    $region10: #{tpu_custom_call.1} parent=1 // pred_check
      _
    $region11: #{tpu_custom_call.1} parent=1 // pred_check_branch
      %16 = sbr.rel (0) target = $region13
    $region12: #{tpu_custom_call.1} parent=1 // pred_region
      _
    $region13: #{tpu_custom_call.1} parent=1 // pred_fallthru
      _
    // Predicated region
    $region14: #{tpu_custom_call.1} parent=1 // pred_check
      _
    $region15: #{tpu_custom_call.1} parent=1 // pred_check_branch
      %18 = sbr.rel (0) target = $region17
    $region16: #{tpu_custom_call.1} parent=1 // pred_region
      _
    $region17: #{tpu_custom_call.1} parent=1 // pred_fallthru
      _
    // Predicated region
    $region18: #{tpu_custom_call.1} parent=1 // pred_check
      _
    $region19: #{tpu_custom_call.1} parent=1 // pred_check_branch
      %20 = sbr.rel (0) target = $region21
    $region20: #{tpu_custom_call.1} parent=1 // pred_region
      _
    $region21: #{tpu_custom_call.1} parent=1 // pred_fallthru
      _
    %v21 = vld [vmem:[%s0] sm:$0xff]
    %v22 = vld [vmem:[%s0 + $0x8] sm:$0xff]
    %v23 = vld [vmem:[%s1] sm:$0xff]
    %v24 = vld [vmem:[%s1 + $0x8] sm:$0xff]
    %v25 = vld [vmem:[%s1 + $0x10] sm:$0xff]
    %v26 = vld [vmem:[%s1 + $0x18] sm:$0xff]
    %v27 = vld [vmem:[%s1 + $0x20] sm:$0xff]
    %v28 = vld [vmem:[%s1 + $0x28] sm:$0xff]
    %v29 = vld [vmem:[%s1 + $0x30] sm:$0xff]
    %v30 = vld [vmem:[%s1 + $0x38] sm:$0xff]
    %v31 = vld [vmem:[%s2] sm:$0x1]
    %v33 = vlaneseq
    %v34 = vshrl.u32 %v33, 7
    %v35 = vsub.s32 0, %v34
    %v36 = vrot.slane %v31, %v35
    %vm38 = vcmask 523264
    %v40 = vsel %vm38, %v21, 0
    %v43 = vsel %vm38, %v22, 0
    %45 = vmatprep.subr.mxu0 0.0
    %46 = vmatpush1.msra.mxu0 %v23
    %47 = vmatprep.subr.mxu0 0.0
    %48 = vmatpush1.msra.mxu0 %v24
    %49 = vmatprep.subr.mxu0 0.0
    %50 = vmatpush1.msra.mxu0 %v25
    %51 = vmatprep.subr.mxu0 0.0
    %52 = vmatpush1.msra.mxu0 %v26
    %53 = vmatprep.subr.mxu0 0.0
    %54 = vmatpush1.msra.mxu0 %v27
    %55 = vmatprep.subr.mxu0 0.0
    %56 = vmatpush1.msra.mxu0 %v28
    %57 = vmatprep.subr.mxu0 0.0
    %58 = vmatpush1.msra.mxu0 %v29
    %59 = vmatprep.subr.mxu0 0.0
    %60 = vmatpush1.msra.mxu0 %v30
    %61 = vmatprep.subr.mxu0 0.0
    %62 = vmatpush1.msra.mxu0 0.0
    %63 = vmatprep.subr.mxu0 0.0
    %64 = vmatpush1.msra.mxu0 0.0
    %65 = vmatprep.subr.mxu0 0.0
    %66 = vmatpush1.msra.mxu0 0.0
    %67 = vmatprep.subr.mxu0 0.0
    %68 = vmatpush1.msra.mxu0 0.0
    %69 = vmatprep.subr.mxu0 0.0
    %70 = vmatpush1.msra.mxu0 0.0
    %71 = vmatprep.subr.mxu0 0.0
    %72 = vmatpush1.msra.mxu0 0.0
    %73 = vmatprep.subr.mxu0 0.0
    %74 = vmatpush1.msra.mxu0 0.0
    %75 = vmatprep.subr.mxu0 0.0
    %76 = vmatpush1.msra.mxu0 0.0
    %77 = vmatprep.subr.mxu0 0.0
    %78 = vmatpush1.msra.mxu0 0.0
    %79 = vmatprep.subr.mxu0 0.0
    %80 = vmatpush1.msra.mxu0 0.0
    %81 = vmatprep.subr.mxu0 0.0
    %82 = vmatpush1.msra.mxu0 0.0
    %83 = vmatprep.subr.mxu0 0.0
    %84 = vmatpush1.msra.mxu0 0.0
    %85 = vmatprep.subr.mxu0 0.0
    %86 = vmatpush1.msra.mxu0 0.0
    %87 = vmatprep.subr.mxu0 0.0
    %88 = vmatpush1.msra.mxu0 0.0
    %89 = vmatprep.subr.mxu0 0.0
    %90 = vmatpush1.msra.mxu0 0.0
    %91 = vmatprep.subr.mxu0 0.0
    %92 = vmatpush1.msra.mxu0 0.0
    %93 = vmatprep.subr.mxu0 0.0
    %94 = vmatpush1.msra.mxu0 0.0
    %95 = vmatprep.subr.mxu0 0.0
    %96 = vmatpush1.msra.mxu0 0.0
    %97 = vmatprep.subr.mxu0 0.0
    %98 = vmatpush1.msra.mxu0 0.0
    %99 = vmatprep.subr.mxu0 0.0
    %100 = vmatpush1.msra.mxu0 0.0
    %101 = vmatprep.subr.mxu0 0.0
    %102 = vmatpush1.msra.mxu0 0.0
    %103 = vmatprep.subr.mxu0 0.0
    %104 = vmatpush1.msra.mxu0 0.0
    %105 = vmatprep.subr.mxu0 0.0
    %106 = vmatpush1.msra.mxu0 0.0
    %107 = vmatprep.subr.mxu0 0.0
    %108 = vmatpush1.msra.mxu0 0.0
    %109 = vmatprep.mubr.f32.mxu0 0.0
    %110 = vmatmul.mubr.f32.gmra.mrb[0].mxu0 %v40
    %v111 = vpop.f32.mrb[0].mxu0
    %v112 = vadd.f32 %v36, %v111
    %v113 = vpop.f32.mrb[0].mxu0
    %114 = vmatprep.mubr.f32.mxu0 0.0
    %115 = vmatmul.mubr.f32.gmra.mrb[0].mxu0 %v43
    %v116 = vpop.f32.mrb[0].mxu0
    %v117 = vadd.f32 %v36, %v116
    %v118 = vpop.f32.mrb[0].mxu0
    %119 = vdwg.mxu0
    %v120 = vmax.f32 %v112, 0.0
    %v121 = vmax.f32 %v117, 0.0
    %v122 = vld [vmem:[%s3] sm:$0xff]
    %v123 = vld [vmem:[%s3 + $0x8] sm:$0xff]
    %v124 = vld [vmem:[%s3 + $0x10] sm:$0xff]
    %v125 = vld [vmem:[%s3 + $0x18] sm:$0xff]
    %v126 = vld [vmem:[%s3 + $0x20] sm:$0xff]
    %v127 = vld [vmem:[%s3 + $0x28] sm:$0xff]
    %v128 = vld [vmem:[%s3 + $0x30] sm:$0xff]
    %v129 = vld [vmem:[%s3 + $0x38] sm:$0xff]
    %v130 = vld [vmem:[%s4] sm:$0x1]
    %v132 = vlaneseq
    %v133 = vshrl.u32 %v132, 7
    %v134 = vsub.s32 0, %v133
    %v135 = vrot.slane %v130, %v134
    %v138 = vsel %vm38, %v120, 0
    %v141 = vsel %vm38, %v121, 0
    %143 = vmatprep.subr.mxu0 0.0
    %144 = vmatpush1.msra.mxu0 %v122
    %145 = vmatprep.subr.mxu0 0.0
    %146 = vmatpush1.msra.mxu0 %v123
    %147 = vmatprep.subr.mxu0 0.0
    %148 = vmatpush1.msra.mxu0 %v124
    %149 = vmatprep.subr.mxu0 0.0
    %150 = vmatpush1.msra.mxu0 %v125
    %151 = vmatprep.subr.mxu0 0.0
    %152 = vmatpush1.msra.mxu0 %v126
    %153 = vmatprep.subr.mxu0 0.0
    %154 = vmatpush1.msra.mxu0 %v127
    %155 = vmatprep.subr.mxu0 0.0
    %156 = vmatpush1.msra.mxu0 %v128
    %157 = vmatprep.subr.mxu0 0.0
    %158 = vmatpush1.msra.mxu0 %v129
    %159 = vmatprep.subr.mxu0 0.0
    %160 = vmatpush1.msra.mxu0 0.0
    %161 = vmatprep.subr.mxu0 0.0
    %162 = vmatpush1.msra.mxu0 0.0
    %163 = vmatprep.subr.mxu0 0.0
    %164 = vmatpush1.msra.mxu0 0.0
    %165 = vmatprep.subr.mxu0 0.0
    %166 = vmatpush1.msra.mxu0 0.0
    %167 = vmatprep.subr.mxu0 0.0
    %168 = vmatpush1.msra.mxu0 0.0
    %169 = vmatprep.subr.mxu0 0.0
    %170 = vmatpush1.msra.mxu0 0.0
    %171 = vmatprep.subr.mxu0 0.0
    %172 = vmatpush1.msra.mxu0 0.0
    %173 = vmatprep.subr.mxu0 0.0
    %174 = vmatpush1.msra.mxu0 0.0
    %175 = vmatprep.subr.mxu0 0.0
    %176 = vmatpush1.msra.mxu0 0.0
    %177 = vmatprep.subr.mxu0 0.0
    %178 = vmatpush1.msra.mxu0 0.0
    %179 = vmatprep.subr.mxu0 0.0
    %180 = vmatpush1.msra.mxu0 0.0
    %181 = vmatprep.subr.mxu0 0.0
    %182 = vmatpush1.msra.mxu0 0.0
    %183 = vmatprep.subr.mxu0 0.0
    %184 = vmatpush1.msra.mxu0 0.0
    %185 = vmatprep.subr.mxu0 0.0
    %186 = vmatpush1.msra.mxu0 0.0
    %187 = vmatprep.subr.mxu0 0.0
    %188 = vmatpush1.msra.mxu0 0.0
    %189 = vmatprep.subr.mxu0 0.0
    %190 = vmatpush1.msra.mxu0 0.0
    %191 = vmatprep.subr.mxu0 0.0
    %192 = vmatpush1.msra.mxu0 0.0
    %193 = vmatprep.subr.mxu0 0.0
    %194 = vmatpush1.msra.mxu0 0.0
    %195 = vmatprep.subr.mxu0 0.0
    %196 = vmatpush1.msra.mxu0 0.0
    %197 = vmatprep.subr.mxu0 0.0
    %198 = vmatpush1.msra.mxu0 0.0
    %199 = vmatprep.subr.mxu0 0.0
    %200 = vmatpush1.msra.mxu0 0.0
    %201 = vmatprep.subr.mxu0 0.0
    %202 = vmatpush1.msra.mxu0 0.0
    %203 = vmatprep.subr.mxu0 0.0
    %204 = vmatpush1.msra.mxu0 0.0
    %205 = vmatprep.subr.mxu0 0.0
    %206 = vmatpush1.msra.mxu0 0.0
    %207 = vmatprep.mubr.f32.mxu0 0.0
    %208 = vmatmul.mubr.f32.gmra.mrb[0].mxu0 %v138
    %v209 = vpop.f32.mrb[0].mxu0
    %v210 = vadd.f32 %v135, %v209
    %v211 = vpop.f32.mrb[0].mxu0
    %212 = vmatprep.mubr.f32.mxu0 0.0
    %213 = vmatmul.mubr.f32.gmra.mrb[0].mxu0 %v141
    %v214 = vpop.f32.mrb[0].mxu0
    %v215 = vadd.f32 %v135, %v214
    %v216 = vpop.f32.mrb[0].mxu0
    %217 = vdwg.mxu0
    %v218 = vmax.f32 %v210, 0.0
    %v219 = vmax.f32 %v215, 0.0
    %vm220 = vcmask 261120
    %221 = vst.msk [vmem:[#allocation2] sm:$0xff] %vm220, %v218
    %222 = vst.msk [vmem:[#allocation2 + $0x8] sm:$0xff] %vm220, %v219
    // Predicated region
    $region22: #{tpu_custom_call.1} parent=1 // pred_check
      _
    $region23: #{tpu_custom_call.1} parent=1 // pred_check_branch
      %224 = sbr.rel (0) target = $region25
    $region24: #{tpu_custom_call.1} parent=1 // pred_region
      %s226 = ssub.s32 256, 256
      %227 = vsyncadd [#allocation3], %s226
      %s228 = sshll.u32 [#allocation2], 4
      %s229 = int_to_ptr.vmem [resolvable:$true] %s228
      %234 = dma.vmem_to_hbm [thread:$0]  %s229, 256, %s5, [#allocation3], 128, 128, 8
    $region25: #{tpu_custom_call.1} parent=1 // pred_fallthru
      _
    // Predicated region
    $region26: #{tpu_custom_call.1} parent=1 // pred_check
      _
    $region27: #{tpu_custom_call.1} parent=1 // pred_check_branch
      %236 = sbr.rel (0) target = $region29
    $region28: #{tpu_custom_call.1} parent=1 // pred_region
      %237 = dma.done [#allocation3], 256
    $region29: #{tpu_custom_call.1} parent=1 // pred_fallthru
      _
    %238 = vsyncpa [#allocation3], 1

</llo_original>
